<compile_context>
chip_gen: v7x
topology: tpu7x:2x2x1
jax: 0.10.0
libtpu: 0.0.40
codegen_flags: <defaults>
</compile_context>

<pallas_src>
import jax
import jax.numpy as jnp
from jax import lax
from jax.experimental import pallas as pl
from jax.experimental.pallas import tpu as pltpu

KH = KW = 3
BN_EPS = 1e-5


def first_conv_kernel(lhs_ref, b_ref, s_ref, st_ref, gb_ref, o_ref):
    # lhs_ref: (N*H, KH*(W+2)*Cin)  bf16  im2col-over-kh input, lanes = (kh,w',cin)
    # b_ref:   (KH*(W+2)*Cin, W*Cout) bf16 banded (Toeplitz-over-W) conv weights
    # s_ref:   (W*Cout, Cout)  f32   lane-column -> channel reduce, pre-scaled by 1/m
    # st_ref:  (Cout, W*Cout)  f32   channel -> lane-column broadcast
    # gb_ref:  (2, Cout)       f32   row 0 = BN gamma, row 1 = BN beta
    # o_ref:   (N*H, W*Cout)   f32   lane-dense output

    # ---- conv3x3: single lane-dense MXU matmul (K=216), f32 accumulate ----
    acc = jnp.dot(lhs_ref[...], b_ref[...], preferred_element_type=jnp.float32)

    # ---- BatchNorm2d (training mode: biased batch variance), one pass ----
    # NOTE: one-pass E[x^2]-mean^2 is fine at this scale; use two-phase /
    # Welford-style partial sums for the tiled large-batch variant.
    stats_in = jnp.concatenate(
        [jnp.sum(acc, axis=0, keepdims=True),
         jnp.sum(acc * acc, axis=0, keepdims=True)], axis=0)        # (2, W*Cout)
    stats = jnp.dot(stats_in, s_ref[...],
                    preferred_element_type=jnp.float32)             # (2, Cout) = [mean, E[x^2]]
    ch_mean = stats[0:1, :]
    var = stats[1:2, :] - ch_mean * ch_mean
    inv_std = lax.rsqrt(var + BN_EPS)
    scale_c = gb_ref[0:1, :] * inv_std                              # (1, Cout)
    bias_c = gb_ref[1:2, :] - ch_mean * scale_c                     # (1, Cout)

    # per-channel scale/bias -> (w, cout) lane layout, single tiny matmul
    sb = jnp.dot(jnp.concatenate([scale_c, bias_c], axis=0), st_ref[...],
                 preferred_element_type=jnp.float32)                # (2, W*Cout)

    # ---- fused affine + ReLU, unmasked lane-dense store (f32 VPU) ----
    o_ref[...] = jnp.maximum(acc * sb[0:1, :] + sb[1:2, :], 0.0).astype(o_ref.dtype)


@jax.jit
def first_conv_forward(x_nchw, w_oihw, gamma, beta):
    """x_nchw: (N, Cin, H, W); w_oihw: (Cout, Cin, 3, 3). stride=1, padding=1."""
    N, Cin, H, W = x_nchw.shape
    Cout = w_oihw.shape[0]
    m = float(N * H * W)

    # NCHW -> NHWC, zero-pad spatially, then wrapper-side im2col over kh:
    # three H-shifted slabs concatenated on the lane axis -> (N*H, 3*(W+2)*Cin).
    x = jnp.transpose(x_nchw, (0, 2, 3, 1)).astype(jnp.float32)
    xp = jnp.pad(x, ((0, 0), (1, 1), (1, 1), (0, 0)))               # (N, H+2, W+2, Cin)
    slabs = [xp[:, kh:kh + H].reshape(N * H, (W + 2) * Cin) for kh in range(KH)]
    lhs = jnp.concatenate(slabs, axis=-1).astype(jnp.bfloat16)      # (N*H, KH*(W+2)*Cin)

    # Banded weight expansion (layout plumbing, done once under jit):
    #   B[kh, w'*Cin+ci, w*Cout+co] = W[kh, w'-w, ci, co] for w'-w in {0,1,2}
    w_hwio = jnp.transpose(w_oihw, (2, 3, 1, 0)).astype(jnp.float32)  # (KH,KW,Cin,Cout)
    sel = (jnp.arange(W + 2)[None, :, None]
           == (jnp.arange(W)[None, None, :]
               + jnp.arange(KW)[:, None, None])).astype(jnp.float32)  # (KW, W+2, W)
    b_banded = jnp.einsum('kpw,hkio->hpiwo', sel, w_hwio).reshape(
        KH * (W + 2) * Cin, W * Cout).astype(jnp.bfloat16)

    # Constant selector matrices for channel-wise reduce / broadcast.
    # 1/m folded into the reduce matrix so the kernel does no extra divide.
    s_mat = jnp.tile(jnp.eye(Cout, dtype=jnp.float32), (W, 1)) / m    # (W*Cout, Cout)
    st_mat = jnp.tile(jnp.eye(Cout, dtype=jnp.float32), (1, W))       # (Cout, W*Cout)

    gb = jnp.stack([gamma.astype(jnp.float32),
                    beta.astype(jnp.float32)], axis=0)                # (2, Cout)

    vmem_specs = [pl.BlockSpec(memory_space=pltpu.MemorySpace.VMEM)
                  for _ in range(5)]

    out_flat = pl.pallas_call(
        first_conv_kernel,
        out_shape=jax.ShapeDtypeStruct((N * H, W * Cout), jnp.float32),
        in_specs=vmem_specs,
        out_specs=pl.BlockSpec(memory_space=pltpu.MemorySpace.VMEM),
    )(lhs, b_banded, s_mat, st_mat, gb)

    # (N*H, W*Cout) -> NCHW to match the PyTorch output convention.
    # (If the downstream consumer accepts NHWC, drop this transpose.)
    out_nhwc = out_flat.reshape(N, H, W, Cout)
    return jnp.transpose(out_nhwc, (0, 3, 1, 2))


def reference_forward(x_nchw, w_oihw, gamma, beta):
    """Pure-JAX reference (conv + train-mode BN + ReLU) for validation."""
    y = jax.lax.conv_general_dilated(
        x_nchw, w_oihw, window_strides=(1, 1), padding=((1, 1), (1, 1)),
        dimension_numbers=("NCHW", "OIHW", "NCHW"))
    mean = y.mean(axis=(0, 2, 3), keepdims=True)
    var = ((y - mean) ** 2).mean(axis=(0, 2, 3), keepdims=True)
    yn = (y - mean) / jnp.sqrt(var + BN_EPS)
    yn = yn * gamma.reshape(1, -1, 1, 1) + beta.reshape(1, -1, 1, 1)
    return jnp.maximum(yn, 0.0)


if __name__ == "__main__":
    # small shapes consistent with the module: N=2, Cin=4, Cout=16, 16x16 spatial
    N, CIN, COUT, H, W = 2, 4, 16, 16, 16

    key = jax.random.PRNGKey(0)
    kx, kw, kg, kb = jax.random.split(key, 4)
    x = jax.random.normal(kx, (N, CIN, H, W), dtype=jnp.float32)
    # conv3x3 weights (bias=False): shape (Cout, Cin, 3, 3)
    conv_w = jax.random.normal(kw, (COUT, CIN, KH, KW), dtype=jnp.float32) * 0.1
    # BatchNorm2d affine params (deterministic, non-trivial)
    bn_gamma = 1.0 + 0.1 * jax.random.normal(kg, (COUT,), dtype=jnp.float32)
    bn_beta = 0.1 * jax.random.normal(kb, (COUT,), dtype=jnp.float32)

    out = first_conv_forward(x, conv_w, bn_gamma, bn_beta)
    out = jax.block_until_ready(out)

    ref = reference_forward(x, conv_w, bn_gamma, bn_beta)
    assert out.shape == (N, COUT, H, W), out.shape
    # Tolerance loosened vs. the all-f32 version because the conv matmul is
    # fed in bf16 (f32 accumulate); BN re-normalization absorbs most of it.
    assert jnp.allclose(out, ref, atol=5e-2, rtol=5e-2), \
        float(jnp.max(jnp.abs(out - ref)))

    print("KERNEL_OK")
</pallas_src>

<mosaic_0001>
module attributes {stable_mosaic.version = 11 : i64} {
  func.func @first_conv_kernel(%arg0: memref<32x216xbf16, #tpu.memory_space<vmem>>, %arg1: memref<216x256xbf16, #tpu.memory_space<vmem>>, %arg2: memref<256x16xf32, #tpu.memory_space<vmem>>, %arg3: memref<16x256xf32, #tpu.memory_space<vmem>>, %arg4: memref<2x16xf32, #tpu.memory_space<vmem>>, %arg5: memref<32x256xf32, #tpu.memory_space<vmem>>) attributes {dimension_semantics = [], scalar_prefetch = 0 : i64, scratch_operands = 0 : i64, tpu.core_type = #tpu.core_type<tc>} {
    %c0 = arith.constant 0 : index
    %c0_0 = arith.constant 0 : index
    %0 = vector.load %arg0[%c0, %c0_0] : memref<32x216xbf16, #tpu.memory_space<vmem>>, vector<32x216xbf16>
    %c0_1 = arith.constant 0 : index
    %c0_2 = arith.constant 0 : index
    %1 = vector.load %arg1[%c0_1, %c0_2] : memref<216x256xbf16, #tpu.memory_space<vmem>>, vector<216x256xbf16>
    %cst = arith.constant dense<0.000000e+00> : vector<32x256xf32>
    %2 = tpu.matmul %0, %1, %cst {dimension_numbers = #tpu.dot_dimension_numbers<[1], [0], [0], [1], [0, 0, 1, 1], [], []>} : vector<32x216xbf16>, vector<216x256xbf16>, vector<32x256xf32> -> vector<32x256xf32>
    %cst_3 = arith.constant dense<0.000000e+00> : vector<256xf32>
    %3 = vector.multi_reduction <add>, %2, %cst_3 [0] : vector<32x256xf32> to vector<256xf32>
    %4 = vector.shape_cast %3 : vector<256xf32> to vector<1x256xf32>
    %5 = arith.mulf %2, %2 : vector<32x256xf32>
    %cst_4 = arith.constant dense<0.000000e+00> : vector<256xf32>
    %6 = vector.multi_reduction <add>, %5, %cst_4 [0] : vector<32x256xf32> to vector<256xf32>
    %7 = vector.shape_cast %6 : vector<256xf32> to vector<1x256xf32>
    %8 = tpu.concatenate %4, %7 in 0 : vector<1x256xf32>, vector<1x256xf32> -> vector<2x256xf32>
    %c0_5 = arith.constant 0 : index
    %c0_6 = arith.constant 0 : index
    %9 = vector.load %arg2[%c0_5, %c0_6] : memref<256x16xf32, #tpu.memory_space<vmem>>, vector<256x16xf32>
    %cst_7 = arith.constant dense<0.000000e+00> : vector<2x16xf32>
    %10 = tpu.matmul %8, %9, %cst_7 {dimension_numbers = #tpu.dot_dimension_numbers<[1], [0], [0], [1], [0, 0, 1, 1], [], []>} : vector<2x256xf32>, vector<256x16xf32>, vector<2x16xf32> -> vector<2x16xf32>
    %11 = vector.extract_strided_slice %10 {offsets = [0, 0], sizes = [1, 16], strides = [1, 1]} : vector<2x16xf32> to vector<1x16xf32>
    %12 = vector.extract_strided_slice %10 {offsets = [1, 0], sizes = [1, 16], strides = [1, 1]} : vector<2x16xf32> to vector<1x16xf32>
    %13 = arith.mulf %11, %11 : vector<1x16xf32>
    %14 = arith.subf %12, %13 : vector<1x16xf32>
    %cst_8 = arith.constant 9.99999974E-6 : f32
    %15 = vector.broadcast %cst_8 : f32 to vector<1x16xf32>
    %16 = arith.addf %14, %15 : vector<1x16xf32>
    %17 = math.rsqrt %16 : vector<1x16xf32>
    %c0_9 = arith.constant 0 : index
    %c0_10 = arith.constant 0 : index
    %18 = vector.load %arg4[%c0_9, %c0_10] : memref<2x16xf32, #tpu.memory_space<vmem>>, vector<1x16xf32>
    %19 = arith.mulf %18, %17 : vector<1x16xf32>
    %c1 = arith.constant 1 : index
    %c0_11 = arith.constant 0 : index
    %20 = vector.load %arg4[%c1, %c0_11] : memref<2x16xf32, #tpu.memory_space<vmem>>, vector<1x16xf32>
    %21 = arith.mulf %11, %19 : vector<1x16xf32>
    %22 = arith.subf %20, %21 : vector<1x16xf32>
    %23 = tpu.concatenate %19, %22 in 0 : vector<1x16xf32>, vector<1x16xf32> -> vector<2x16xf32>
    %c0_12 = arith.constant 0 : index
    %c0_13 = arith.constant 0 : index
    %24 = vector.load %arg3[%c0_12, %c0_13] : memref<16x256xf32, #tpu.memory_space<vmem>>, vector<16x256xf32>
    %cst_14 = arith.constant dense<0.000000e+00> : vector<2x256xf32>
    %25 = tpu.matmul %23, %24, %cst_14 {dimension_numbers = #tpu.dot_dimension_numbers<[1], [0], [0], [1], [0, 0, 1, 1], [], []>} : vector<2x16xf32>, vector<16x256xf32>, vector<2x256xf32> -> vector<2x256xf32>
    %26 = vector.extract_strided_slice %25 {offsets = [0, 0], sizes = [1, 256], strides = [1, 1]} : vector<2x256xf32> to vector<1x256xf32>
    %27 = vector.broadcast %26 : vector<1x256xf32> to vector<32x256xf32>
    %28 = arith.mulf %2, %27 : vector<32x256xf32>
    %29 = vector.extract_strided_slice %25 {offsets = [1, 0], sizes = [1, 256], strides = [1, 1]} : vector<2x256xf32> to vector<1x256xf32>
    %30 = vector.broadcast %29 : vector<1x256xf32> to vector<32x256xf32>
    %31 = arith.addf %28, %30 : vector<32x256xf32>
    %cst_15 = arith.constant 0.000000e+00 : f32
    %32 = vector.broadcast %cst_15 : f32 to vector<32x256xf32>
    %33 = arith.maximumf %31, %32 : vector<32x256xf32>
    %c0_16 = arith.constant 0 : index
    %c0_17 = arith.constant 0 : index
    %34 = vector.load %arg5[%c0_16, %c0_17] : memref<32x256xf32, #tpu.memory_space<vmem>>, vector<32x256xf32>
    tpu.vector_store %arg5[%c0_16, %c0_17], %33 {strides = array<i32>} : memref<32x256xf32, #tpu.memory_space<vmem>>, vector<32x256xf32>,
    return
  }
}

</mosaic_0001>

<llo_original>
// kernel: tile.19
$region0: #{tile.19}
  %s0 = inlined_call_operand.vmem [shape: f32[16,16,16], index: 0, kind: input, shape index: {}]
  %s1 = inlined_call_operand.vmem [shape: f32[16,256], index: 1, kind: output, shape index: {}]
  %v2 = vld [vmem:[%s0] ss:$8 sm:$0xf]
  %v3 = vld [vmem:[%s0] ss:$8 sm:$0xf0]
  %vm4 = vcmask 1047556
  %v5 = vsel %vm4, %v3, %v2
  %vm6 = vcmask 130048
  %7 = vst.msk [vmem:[%s1] ss:$8 sm:$0x3] %vm6, %v5
  %s8 = scalar_lea.vmem %s1, 4294967281
  %9 = vst.msk [vmem:[%s8] ss:$8 sm:$0xc] %vm6, %v5
  %s10 = scalar_lea.vmem %s1, 4294967266
  %11 = vst.msk [vmem:[%s10] ss:$8 sm:$0x30] %vm6, %v5
  %s12 = scalar_lea.vmem %s1, 4294967251
  %13 = vst.msk [vmem:[%s12] ss:$8 sm:$0xc0] %vm6, %v5
  %s14 = scalar_lea.vmem %s0, 64
  %v15 = vld [vmem:[%s14] ss:$8 sm:$0xf]
  %s16 = scalar_lea.vmem %s0, 64
  %v17 = vld [vmem:[%s16] ss:$8 sm:$0xf0]
  %vm18 = vcmask 1047556
  %v19 = vsel %vm18, %v17, %v15
  %vm20 = vcmask 130048
  %s21 = scalar_lea.vmem %s1, 4
  %22 = vst.msk [vmem:[%s21] ss:$8 sm:$0x3] %vm20, %v19
  %s23 = scalar_lea.vmem %s1, 4294967285
  %24 = vst.msk [vmem:[%s23] ss:$8 sm:$0xc] %vm20, %v19
  %s25 = scalar_lea.vmem %s1, 4294967270
  %26 = vst.msk [vmem:[%s25] ss:$8 sm:$0x30] %vm20, %v19
  %s27 = scalar_lea.vmem %s1, 4294967255
  %28 = vst.msk [vmem:[%s27] ss:$8 sm:$0xc0] %vm20, %v19
  %s29 = scalar_lea.vmem %s0, 128
  %v30 = vld [vmem:[%s29] ss:$8 sm:$0xf]
  %s31 = scalar_lea.vmem %s0, 128
  %v32 = vld [vmem:[%s31] ss:$8 sm:$0xf0]
  %vm33 = vcmask 1047556
  %v34 = vsel %vm33, %v32, %v30
  %vm35 = vcmask 130048
  %s36 = scalar_lea.vmem %s1, 16
  %37 = vst.msk [vmem:[%s36] ss:$8 sm:$0x3] %vm35, %v34
  %s38 = scalar_lea.vmem %s1, 1
  %39 = vst.msk [vmem:[%s38] ss:$8 sm:$0xc] %vm35, %v34
  %s40 = scalar_lea.vmem %s1, 4294967282
  %41 = vst.msk [vmem:[%s40] ss:$8 sm:$0x30] %vm35, %v34
  %s42 = scalar_lea.vmem %s1, 4294967267
  %43 = vst.msk [vmem:[%s42] ss:$8 sm:$0xc0] %vm35, %v34
  %s44 = scalar_lea.vmem %s0, 192
  %v45 = vld [vmem:[%s44] ss:$8 sm:$0xf]
  %s46 = scalar_lea.vmem %s0, 192
  %v47 = vld [vmem:[%s46] ss:$8 sm:$0xf0]
  %vm48 = vcmask 1047556
  %v49 = vsel %vm48, %v47, %v45
  %vm50 = vcmask 130048
  %s51 = scalar_lea.vmem %s1, 20
  %52 = vst.msk [vmem:[%s51] ss:$8 sm:$0x3] %vm50, %v49
  %s53 = scalar_lea.vmem %s1, 5
  %54 = vst.msk [vmem:[%s53] ss:$8 sm:$0xc] %vm50, %v49
  %s55 = scalar_lea.vmem %s1, 4294967286
  %56 = vst.msk [vmem:[%s55] ss:$8 sm:$0x30] %vm50, %v49
  %s57 = scalar_lea.vmem %s1, 4294967271
  %58 = vst.msk [vmem:[%s57] ss:$8 sm:$0xc0] %vm50, %v49
  %s59 = scalar_lea.vmem %s0, 7
  %s60 = smov 3
  %v61 = vld [vmem:[%s59] ss:$16 sm:%s60]
  %s62 = scalar_lea.vmem %s0, 7
  %s63 = smov 12
  %v64 = vld [vmem:[%s62] ss:$16 sm:%s63]
  %vm65 = vcmask 1043458
  %v66 = vsel %vm65, %v64, %v61
  %s67 = scalar_lea.vmem %s0, 7
  %s68 = smov 48
  %v69 = vld [vmem:[%s67] ss:$16 sm:%s68]
  %vm70 = vcmask 1045508
  %v71 = vsel %vm70, %v69, %v66
  %s72 = scalar_lea.vmem %s0, 7
  %s73 = smov 192
  %v74 = vld [vmem:[%s72] ss:$16 sm:%s73]
  %vm75 = vcmask 1047558
  %v76 = vsel %vm75, %v74, %v71
  %77 = vrot.lane.b32.xlu0 %v76, 112
  %v78 = vpop.permute.xlu0 %77
  %vm79 = vcmask 1048448
  %80 = vst.msk [vmem:[%s1] sm:$0xff] %vm79, %v78
  %s81 = scalar_lea.vmem %s0, 15
  %s82 = smov 3
  %v83 = vld [vmem:[%s81] ss:$16 sm:%s82]
  %s84 = scalar_lea.vmem %s0, 15
  %s85 = smov 12
  %v86 = vld [vmem:[%s84] ss:$16 sm:%s85]
  %vm87 = vcmask 1043458
  %v88 = vsel %vm87, %v86, %v83
  %s89 = scalar_lea.vmem %s0, 15
  %s90 = smov 48
  %v91 = vld [vmem:[%s89] ss:$16 sm:%s90]
  %vm92 = vcmask 1045508
  %v93 = vsel %vm92, %v91, %v88
  %s94 = scalar_lea.vmem %s0, 15
  %s95 = smov 192
  %v96 = vld [vmem:[%s94] ss:$16 sm:%s95]
  %vm97 = vcmask 1047558
  %v98 = vsel %vm97, %v96, %v93
  %99 = vrot.lane.b32.xlu0 %v98, 112
  %v100 = vpop.permute.xlu0 %99
  %vm101 = vcmask 1048448
  %s102 = scalar_lea.vmem %s1, 8
  %103 = vst.msk [vmem:[%s102] sm:$0xff] %vm101, %v100
  %s104 = scalar_lea.vmem %s0, 135
  %s105 = smov 3
  %v106 = vld [vmem:[%s104] ss:$16 sm:%s105]
  %s107 = scalar_lea.vmem %s0, 135
  %s108 = smov 12
  %v109 = vld [vmem:[%s107] ss:$16 sm:%s108]
  %vm110 = vcmask 1043458
  %v111 = vsel %vm110, %v109, %v106
  %s112 = scalar_lea.vmem %s0, 135
  %s113 = smov 48
  %v114 = vld [vmem:[%s112] ss:$16 sm:%s113]
  %vm115 = vcmask 1045508
  %v116 = vsel %vm115, %v114, %v111
  %s117 = scalar_lea.vmem %s0, 135
  %s118 = smov 192
  %v119 = vld [vmem:[%s117] ss:$16 sm:%s118]
  %vm120 = vcmask 1047558
  %v121 = vsel %vm120, %v119, %v116
  %122 = vrot.lane.b32.xlu0 %v121, 112
  %v123 = vpop.permute.xlu0 %122
  %vm124 = vcmask 1048448
  %s125 = scalar_lea.vmem %s1, 16
  %126 = vst.msk [vmem:[%s125] sm:$0xff] %vm124, %v123
  %s127 = scalar_lea.vmem %s0, 143
  %s128 = smov 3
  %v129 = vld [vmem:[%s127] ss:$16 sm:%s128]
  %s130 = scalar_lea.vmem %s0, 143
  %s131 = smov 12
  %v132 = vld [vmem:[%s130] ss:$16 sm:%s131]
  %vm133 = vcmask 1043458
  %v134 = vsel %vm133, %v132, %v129
  %s135 = scalar_lea.vmem %s0, 143
  %s136 = smov 48
  %v137 = vld [vmem:[%s135] ss:$16 sm:%s136]
  %vm138 = vcmask 1045508
  %v139 = vsel %vm138, %v137, %v134
  %s140 = scalar_lea.vmem %s0, 143
  %s141 = smov 192
  %v142 = vld [vmem:[%s140] ss:$16 sm:%s141]
  %vm143 = vcmask 1047558
  %v144 = vsel %vm143, %v142, %v139
  %145 = vrot.lane.b32.xlu0 %v144, 112
  %v146 = vpop.permute.xlu0 %145
  %vm147 = vcmask 1048448
  %s148 = scalar_lea.vmem %s1, 24
  %149 = vst.msk [vmem:[%s148] sm:$0xff] %vm147, %v146
  %s150 = scalar_lea.vmem %s0, 6
  %s151 = smov 3
  %v152 = vld [vmem:[%s150] ss:$16 sm:%s151]
  %s153 = scalar_lea.vmem %s0, 6
  %s154 = smov 12
  %v155 = vld [vmem:[%s153] ss:$16 sm:%s154]
  %vm156 = vcmask 1043458
  %v157 = vsel %vm156, %v155, %v152
  %s158 = scalar_lea.vmem %s0, 6
  %s159 = smov 48
  %v160 = vld [vmem:[%s158] ss:$16 sm:%s159]
  %vm161 = vcmask 1045508
  %v162 = vsel %vm161, %v160, %v157
  %s163 = scalar_lea.vmem %s0, 6
  %s164 = smov 192
  %v165 = vld [vmem:[%s163] ss:$16 sm:%s164]
  %vm166 = vcmask 1047558
  %v167 = vsel %vm166, %v165, %v162
  %168 = vrot.lane.b32.xlu0 %v167, 96
  %v169 = vpop.permute.xlu0 %168
  %vm170 = vcmask 917248
  %171 = vst.msk [vmem:[%s1] sm:$0xff] %vm170, %v169
  %s172 = scalar_lea.vmem %s0, 14
  %s173 = smov 3
  %v174 = vld [vmem:[%s172] ss:$16 sm:%s173]
  %s175 = scalar_lea.vmem %s0, 14
  %s176 = smov 12
  %v177 = vld [vmem:[%s175] ss:$16 sm:%s176]
  %vm178 = vcmask 1043458
  %v179 = vsel %vm178, %v177, %v174
  %s180 = scalar_lea.vmem %s0, 14
  %s181 = smov 48
  %v182 = vld [vmem:[%s180] ss:$16 sm:%s181]
  %vm183 = vcmask 1045508
  %v184 = vsel %vm183, %v182, %v179
  %s185 = scalar_lea.vmem %s0, 14
  %s186 = smov 192
  %v187 = vld [vmem:[%s185] ss:$16 sm:%s186]
  %vm188 = vcmask 1047558
  %v189 = vsel %vm188, %v187, %v184
  %190 = vrot.lane.b32.xlu0 %v189, 96
  %v191 = vpop.permute.xlu0 %190
  %vm192 = vcmask 917248
  %s193 = scalar_lea.vmem %s1, 8
  %194 = vst.msk [vmem:[%s193] sm:$0xff] %vm192, %v191
  %s195 = scalar_lea.vmem %s0, 134
  %s196 = smov 3
  %v197 = vld [vmem:[%s195] ss:$16 sm:%s196]
  %s198 = scalar_lea.vmem %s0, 134
  %s199 = smov 12
  %v200 = vld [vmem:[%s198] ss:$16 sm:%s199]
  %vm201 = vcmask 1043458
  %v202 = vsel %vm201, %v200, %v197
  %s203 = scalar_lea.vmem %s0, 134
  %s204 = smov 48
  %v205 = vld [vmem:[%s203] ss:$16 sm:%s204]
  %vm206 = vcmask 1045508
  %v207 = vsel %vm206, %v205, %v202
  %s208 = scalar_lea.vmem %s0, 134
  %s209 = smov 192
  %v210 = vld [vmem:[%s208] ss:$16 sm:%s209]
  %vm211 = vcmask 1047558
  %v212 = vsel %vm211, %v210, %v207
  %213 = vrot.lane.b32.xlu0 %v212, 96
  %v214 = vpop.permute.xlu0 %213
  %vm215 = vcmask 917248
  %s216 = scalar_lea.vmem %s1, 16
  %217 = vst.msk [vmem:[%s216] sm:$0xff] %vm215, %v214
  %s218 = scalar_lea.vmem %s0, 142
  %s219 = smov 3
  %v220 = vld [vmem:[%s218] ss:$16 sm:%s219]
  %s221 = scalar_lea.vmem %s0, 142
  %s222 = smov 12
  %v223 = vld [vmem:[%s221] ss:$16 sm:%s222]
  %vm224 = vcmask 1043458
  %v225 = vsel %vm224, %v223, %v220
  %s226 = scalar_lea.vmem %s0, 142
  %s227 = smov 48
  %v228 = vld [vmem:[%s226] ss:$16 sm:%s227]
  %vm229 = vcmask 1045508
  %v230 = vsel %vm229, %v228, %v225
  %s231 = scalar_lea.vmem %s0, 142
  %s232 = smov 192
  %v233 = vld [vmem:[%s231] ss:$16 sm:%s232]
  %vm234 = vcmask 1047558
  %v235 = vsel %vm234, %v233, %v230
  %236 = vrot.lane.b32.xlu0 %v235, 96
  %v237 = vpop.permute.xlu0 %236
  %vm238 = vcmask 917248
  %s239 = scalar_lea.vmem %s1, 24
  %240 = vst.msk [vmem:[%s239] sm:$0xff] %vm238, %v237
  %s241 = scalar_lea.vmem %s0, 5
  %s242 = smov 3
  %v243 = vld [vmem:[%s241] ss:$16 sm:%s242]
  %s244 = scalar_lea.vmem %s0, 5
  %s245 = smov 12
  %v246 = vld [vmem:[%s244] ss:$16 sm:%s245]
  %vm247 = vcmask 1043458
  %v248 = vsel %vm247, %v246, %v243
  %s249 = scalar_lea.vmem %s0, 5
  %s250 = smov 48
  %v251 = vld [vmem:[%s249] ss:$16 sm:%s250]
  %vm252 = vcmask 1045508
  %v253 = vsel %vm252, %v251, %v248
  %s254 = scalar_lea.vmem %s0, 5
  %s255 = smov 192
  %v256 = vld [vmem:[%s254] ss:$16 sm:%s255]
  %vm257 = vcmask 1047558
  %v258 = vsel %vm257, %v256, %v253
  %259 = vrot.lane.b32.xlu0 %v258, 80
  %v260 = vpop.permute.xlu0 %259
  %vm261 = vcmask 786048
  %262 = vst.msk [vmem:[%s1] sm:$0xff] %vm261, %v260
  %s263 = scalar_lea.vmem %s0, 13
  %s264 = smov 3
  %v265 = vld [vmem:[%s263] ss:$16 sm:%s264]
  %s266 = scalar_lea.vmem %s0, 13
  %s267 = smov 12
  %v268 = vld [vmem:[%s266] ss:$16 sm:%s267]
  %vm269 = vcmask 1043458
  %v270 = vsel %vm269, %v268, %v265
  %s271 = scalar_lea.vmem %s0, 13
  %s272 = smov 48
  %v273 = vld [vmem:[%s271] ss:$16 sm:%s272]
  %vm274 = vcmask 1045508
  %v275 = vsel %vm274, %v273, %v270
  %s276 = scalar_lea.vmem %s0, 13
  %s277 = smov 192
  %v278 = vld [vmem:[%s276] ss:$16 sm:%s277]
  %vm279 = vcmask 1047558
  %v280 = vsel %vm279, %v278, %v275
  %281 = vrot.lane.b32.xlu0 %v280, 80
  %v282 = vpop.permute.xlu0 %281
  %vm283 = vcmask 786048
  %s284 = scalar_lea.vmem %s1, 8
  %285 = vst.msk [vmem:[%s284] sm:$0xff] %vm283, %v282
  %s286 = scalar_lea.vmem %s0, 133
  %s287 = smov 3
  %v288 = vld [vmem:[%s286] ss:$16 sm:%s287]
  %s289 = scalar_lea.vmem %s0, 133
  %s290 = smov 12
  %v291 = vld [vmem:[%s289] ss:$16 sm:%s290]
  %vm292 = vcmask 1043458
  %v293 = vsel %vm292, %v291, %v288
  %s294 = scalar_lea.vmem %s0, 133
  %s295 = smov 48
  %v296 = vld [vmem:[%s294] ss:$16 sm:%s295]
  %vm297 = vcmask 1045508
  %v298 = vsel %vm297, %v296, %v293
  %s299 = scalar_lea.vmem %s0, 133
  %s300 = smov 192
  %v301 = vld [vmem:[%s299] ss:$16 sm:%s300]
  %vm302 = vcmask 1047558
  %v303 = vsel %vm302, %v301, %v298
  %304 = vrot.lane.b32.xlu0 %v303, 80
  %v305 = vpop.permute.xlu0 %304
  %vm306 = vcmask 786048
  %s307 = scalar_lea.vmem %s1, 16
  %308 = vst.msk [vmem:[%s307] sm:$0xff] %vm306, %v305
  %s309 = scalar_lea.vmem %s0, 141
  %s310 = smov 3
  %v311 = vld [vmem:[%s309] ss:$16 sm:%s310]
  %s312 = scalar_lea.vmem %s0, 141
  %s313 = smov 12
  %v314 = vld [vmem:[%s312] ss:$16 sm:%s313]
  %vm315 = vcmask 1043458
  %v316 = vsel %vm315, %v314, %v311
  %s317 = scalar_lea.vmem %s0, 141
  %s318 = smov 48
  %v319 = vld [vmem:[%s317] ss:$16 sm:%s318]
  %vm320 = vcmask 1045508
  %v321 = vsel %vm320, %v319, %v316
  %s322 = scalar_lea.vmem %s0, 141
  %s323 = smov 192
  %v324 = vld [vmem:[%s322] ss:$16 sm:%s323]
  %vm325 = vcmask 1047558
  %v326 = vsel %vm325, %v324, %v321
  %327 = vrot.lane.b32.xlu0 %v326, 80
  %v328 = vpop.permute.xlu0 %327
  %vm329 = vcmask 786048
  %s330 = scalar_lea.vmem %s1, 24
  %331 = vst.msk [vmem:[%s330] sm:$0xff] %vm329, %v328
  %s332 = scalar_lea.vmem %s0, 4
  %s333 = smov 3
  %v334 = vld [vmem:[%s332] ss:$16 sm:%s333]
  %s335 = scalar_lea.vmem %s0, 4
  %s336 = smov 12
  %v337 = vld [vmem:[%s335] ss:$16 sm:%s336]
  %vm338 = vcmask 1043458
  %v339 = vsel %vm338, %v337, %v334
  %s340 = scalar_lea.vmem %s0, 4
  %s341 = smov 48
  %v342 = vld [vmem:[%s340] ss:$16 sm:%s341]
  %vm343 = vcmask 1045508
  %v344 = vsel %vm343, %v342, %v339
  %s345 = scalar_lea.vmem %s0, 4
  %s346 = smov 192
  %v347 = vld [vmem:[%s345] ss:$16 sm:%s346]
  %vm348 = vcmask 1047558
  %v349 = vsel %vm348, %v347, %v344
  %350 = vrot.lane.b32.xlu0 %v349, 64
  %v351 = vpop.permute.xlu0 %350
  %vm352 = vcmask 654848
  %353 = vst.msk [vmem:[%s1] sm:$0xff] %vm352, %v351
  %s354 = scalar_lea.vmem %s0, 12
  %s355 = smov 3
  %v356 = vld [vmem:[%s354] ss:$16 sm:%s355]
  %s357 = scalar_lea.vmem %s0, 12
  %s358 = smov 12
  %v359 = vld [vmem:[%s357] ss:$16 sm:%s358]
  %vm360 = vcmask 1043458
  %v361 = vsel %vm360, %v359, %v356
  %s362 = scalar_lea.vmem %s0, 12
  %s363 = smov 48
  %v364 = vld [vmem:[%s362] ss:$16 sm:%s363]
  %vm365 = vcmask 1045508
  %v366 = vsel %vm365, %v364, %v361
  %s367 = scalar_lea.vmem %s0, 12
  %s368 = smov 192
  %v369 = vld [vmem:[%s367] ss:$16 sm:%s368]
  %vm370 = vcmask 1047558
  %v371 = vsel %vm370, %v369, %v366
  %372 = vrot.lane.b32.xlu0 %v371, 64
  %v373 = vpop.permute.xlu0 %372
  %vm374 = vcmask 654848
  %s375 = scalar_lea.vmem %s1, 8
  %376 = vst.msk [vmem:[%s375] sm:$0xff] %vm374, %v373
  %s377 = scalar_lea.vmem %s0, 132
  %s378 = smov 3
  %v379 = vld [vmem:[%s377] ss:$16 sm:%s378]
  %s380 = scalar_lea.vmem %s0, 132
  %s381 = smov 12
  %v382 = vld [vmem:[%s380] ss:$16 sm:%s381]
  %vm383 = vcmask 1043458
  %v384 = vsel %vm383, %v382, %v379
  %s385 = scalar_lea.vmem %s0, 132
  %s386 = smov 48
  %v387 = vld [vmem:[%s385] ss:$16 sm:%s386]
  %vm388 = vcmask 1045508
  %v389 = vsel %vm388, %v387, %v384
  %s390 = scalar_lea.vmem %s0, 132
  %s391 = smov 192
  %v392 = vld [vmem:[%s390] ss:$16 sm:%s391]
  %vm393 = vcmask 1047558
  %v394 = vsel %vm393, %v392, %v389
  %395 = vrot.lane.b32.xlu0 %v394, 64
  %v396 = vpop.permute.xlu0 %395
  %vm397 = vcmask 654848
  %s398 = scalar_lea.vmem %s1, 16
  %399 = vst.msk [vmem:[%s398] sm:$0xff] %vm397, %v396
  %s400 = scalar_lea.vmem %s0, 140
  %s401 = smov 3
  %v402 = vld [vmem:[%s400] ss:$16 sm:%s401]
  %s403 = scalar_lea.vmem %s0, 140
  %s404 = smov 12
  %v405 = vld [vmem:[%s403] ss:$16 sm:%s404]
  %vm406 = vcmask 1043458
  %v407 = vsel %vm406, %v405, %v402
  %s408 = scalar_lea.vmem %s0, 140
  %s409 = smov 48
  %v410 = vld [vmem:[%s408] ss:$16 sm:%s409]
  %vm411 = vcmask 1045508
  %v412 = vsel %vm411, %v410, %v407
  %s413 = scalar_lea.vmem %s0, 140
  %s414 = smov 192
  %v415 = vld [vmem:[%s413] ss:$16 sm:%s414]
  %vm416 = vcmask 1047558
  %v417 = vsel %vm416, %v415, %v412
  %418 = vrot.lane.b32.xlu0 %v417, 64
  %v419 = vpop.permute.xlu0 %418
  %vm420 = vcmask 654848
  %s421 = scalar_lea.vmem %s1, 24
  %422 = vst.msk [vmem:[%s421] sm:$0xff] %vm420, %v419
  %s423 = scalar_lea.vmem %s0, 3
  %s424 = smov 3
  %v425 = vld [vmem:[%s423] ss:$16 sm:%s424]
  %s426 = scalar_lea.vmem %s0, 3
  %s427 = smov 12
  %v428 = vld [vmem:[%s426] ss:$16 sm:%s427]
  %vm429 = vcmask 1043458
  %v430 = vsel %vm429, %v428, %v425
  %s431 = scalar_lea.vmem %s0, 3
  %s432 = smov 48
  %v433 = vld [vmem:[%s431] ss:$16 sm:%s432]
  %vm434 = vcmask 1045508
  %v435 = vsel %vm434, %v433, %v430
  %s436 = scalar_lea.vmem %s0, 3
  %s437 = smov 192
  %v438 = vld [vmem:[%s436] ss:$16 sm:%s437]
  %vm439 = vcmask 1047558
  %v440 = vsel %vm439, %v438, %v435
  %441 = vrot.lane.b32.xlu0 %v440, 48
  %v442 = vpop.permute.xlu0 %441
  %vm443 = vcmask 523648
  %444 = vst.msk [vmem:[%s1] sm:$0xff] %vm443, %v442
  %s445 = scalar_lea.vmem %s0, 11
  %s446 = smov 3
  %v447 = vld [vmem:[%s445] ss:$16 sm:%s446]
  %s448 = scalar_lea.vmem %s0, 11
  %s449 = smov 12
  %v450 = vld [vmem:[%s448] ss:$16 sm:%s449]
  %vm451 = vcmask 1043458
  %v452 = vsel %vm451, %v450, %v447
  %s453 = scalar_lea.vmem %s0, 11
  %s454 = smov 48
  %v455 = vld [vmem:[%s453] ss:$16 sm:%s454]
  %vm456 = vcmask 1045508
  %v457 = vsel %vm456, %v455, %v452
  %s458 = scalar_lea.vmem %s0, 11
  %s459 = smov 192
  %v460 = vld [vmem:[%s458] ss:$16 sm:%s459]
  %vm461 = vcmask 1047558
  %v462 = vsel %vm461, %v460, %v457
  %463 = vrot.lane.b32.xlu0 %v462, 48
  %v464 = vpop.permute.xlu0 %463
  %vm465 = vcmask 523648
  %s466 = scalar_lea.vmem %s1, 8
  %467 = vst.msk [vmem:[%s466] sm:$0xff] %vm465, %v464
  %s468 = scalar_lea.vmem %s0, 131
  %s469 = smov 3
  %v470 = vld [vmem:[%s468] ss:$16 sm:%s469]
  %s471 = scalar_lea.vmem %s0, 131
  %s472 = smov 12
  %v473 = vld [vmem:[%s471] ss:$16 sm:%s472]
  %vm474 = vcmask 1043458
  %v475 = vsel %vm474, %v473, %v470
  %s476 = scalar_lea.vmem %s0, 131
  %s477 = smov 48
  %v478 = vld [vmem:[%s476] ss:$16 sm:%s477]
  %vm479 = vcmask 1045508
  %v480 = vsel %vm479, %v478, %v475
  %s481 = scalar_lea.vmem %s0, 131
  %s482 = smov 192
  %v483 = vld [vmem:[%s481] ss:$16 sm:%s482]
  %vm484 = vcmask 1047558
  %v485 = vsel %vm484, %v483, %v480
  %486 = vrot.lane.b32.xlu0 %v485, 48
  %v487 = vpop.permute.xlu0 %486
  %vm488 = vcmask 523648
  %s489 = scalar_lea.vmem %s1, 16
  %490 = vst.msk [vmem:[%s489] sm:$0xff] %vm488, %v487
  %s491 = scalar_lea.vmem %s0, 139
  %s492 = smov 3
  %v493 = vld [vmem:[%s491] ss:$16 sm:%s492]
  %s494 = scalar_lea.vmem %s0, 139
  %s495 = smov 12
  %v496 = vld [vmem:[%s494] ss:$16 sm:%s495]
  %vm497 = vcmask 1043458
  %v498 = vsel %vm497, %v496, %v493
  %s499 = scalar_lea.vmem %s0, 139
  %s500 = smov 48
  %v501 = vld [vmem:[%s499] ss:$16 sm:%s500]
  %vm502 = vcmask 1045508
  %v503 = vsel %vm502, %v501, %v498
  %s504 = scalar_lea.vmem %s0, 139
  %s505 = smov 192
  %v506 = vld [vmem:[%s504] ss:$16 sm:%s505]
  %vm507 = vcmask 1047558
  %v508 = vsel %vm507, %v506, %v503
  %509 = vrot.lane.b32.xlu0 %v508, 48
  %v510 = vpop.permute.xlu0 %509
  %vm511 = vcmask 523648
  %s512 = scalar_lea.vmem %s1, 24
  %513 = vst.msk [vmem:[%s512] sm:$0xff] %vm511, %v510
  %s514 = scalar_lea.vmem %s0, 2
  %s515 = smov 3
  %v516 = vld [vmem:[%s514] ss:$16 sm:%s515]
  %s517 = scalar_lea.vmem %s0, 2
  %s518 = smov 12
  %v519 = vld [vmem:[%s517] ss:$16 sm:%s518]
  %vm520 = vcmask 1043458
  %v521 = vsel %vm520, %v519, %v516
  %s522 = scalar_lea.vmem %s0, 2
  %s523 = smov 48
  %v524 = vld [vmem:[%s522] ss:$16 sm:%s523]
  %vm525 = vcmask 1045508
  %v526 = vsel %vm525, %v524, %v521
  %s527 = scalar_lea.vmem %s0, 2
  %s528 = smov 192
  %v529 = vld [vmem:[%s527] ss:$16 sm:%s528]
  %vm530 = vcmask 1047558
  %v531 = vsel %vm530, %v529, %v526
  %532 = vrot.lane.b32.xlu0 %v531, 32
  %v533 = vpop.permute.xlu0 %532
  %vm534 = vcmask 392448
  %535 = vst.msk [vmem:[%s1] sm:$0xff] %vm534, %v533
  %s536 = scalar_lea.vmem %s0, 10
  %s537 = smov 3
  %v538 = vld [vmem:[%s536] ss:$16 sm:%s537]
  %s539 = scalar_lea.vmem %s0, 10
  %s540 = smov 12
  %v541 = vld [vmem:[%s539] ss:$16 sm:%s540]
  %vm542 = vcmask 1043458
  %v543 = vsel %vm542, %v541, %v538
  %s544 = scalar_lea.vmem %s0, 10
  %s545 = smov 48
  %v546 = vld [vmem:[%s544] ss:$16 sm:%s545]
  %vm547 = vcmask 1045508
  %v548 = vsel %vm547, %v546, %v543
  %s549 = scalar_lea.vmem %s0, 10
  %s550 = smov 192
  %v551 = vld [vmem:[%s549] ss:$16 sm:%s550]
  %vm552 = vcmask 1047558
  %v553 = vsel %vm552, %v551, %v548
  %554 = vrot.lane.b32.xlu0 %v553, 32
  %v555 = vpop.permute.xlu0 %554
  %vm556 = vcmask 392448
  %s557 = scalar_lea.vmem %s1, 8
  %558 = vst.msk [vmem:[%s557] sm:$0xff] %vm556, %v555
  %s559 = scalar_lea.vmem %s0, 130
  %s560 = smov 3
  %v561 = vld [vmem:[%s559] ss:$16 sm:%s560]
  %s562 = scalar_lea.vmem %s0, 130
  %s563 = smov 12
  %v564 = vld [vmem:[%s562] ss:$16 sm:%s563]
  %vm565 = vcmask 1043458
  %v566 = vsel %vm565, %v564, %v561
  %s567 = scalar_lea.vmem %s0, 130
  %s568 = smov 48
  %v569 = vld [vmem:[%s567] ss:$16 sm:%s568]
  %vm570 = vcmask 1045508
  %v571 = vsel %vm570, %v569, %v566
  %s572 = scalar_lea.vmem %s0, 130
  %s573 = smov 192
  %v574 = vld [vmem:[%s572] ss:$16 sm:%s573]
  %vm575 = vcmask 1047558
  %v576 = vsel %vm575, %v574, %v571
  %577 = vrot.lane.b32.xlu0 %v576, 32
  %v578 = vpop.permute.xlu0 %577
  %vm579 = vcmask 392448
  %s580 = scalar_lea.vmem %s1, 16
  %581 = vst.msk [vmem:[%s580] sm:$0xff] %vm579, %v578
  %s582 = scalar_lea.vmem %s0, 138
  %s583 = smov 3
  %v584 = vld [vmem:[%s582] ss:$16 sm:%s583]
  %s585 = scalar_lea.vmem %s0, 138
  %s586 = smov 12
  %v587 = vld [vmem:[%s585] ss:$16 sm:%s586]
  %vm588 = vcmask 1043458
  %v589 = vsel %vm588, %v587, %v584
  %s590 = scalar_lea.vmem %s0, 138
  %s591 = smov 48
  %v592 = vld [vmem:[%s590] ss:$16 sm:%s591]
  %vm593 = vcmask 1045508
  %v594 = vsel %vm593, %v592, %v589
  %s595 = scalar_lea.vmem %s0, 138
  %s596 = smov 192
  %v597 = vld [vmem:[%s595] ss:$16 sm:%s596]
  %vm598 = vcmask 1047558
  %v599 = vsel %vm598, %v597, %v594
  %600 = vrot.lane.b32.xlu0 %v599, 32
  %v601 = vpop.permute.xlu0 %600
  %vm602 = vcmask 392448
  %s603 = scalar_lea.vmem %s1, 24
  %604 = vst.msk [vmem:[%s603] sm:$0xff] %vm602, %v601
  %s605 = scalar_lea.vmem %s0, 1
  %s606 = smov 3
  %v607 = vld [vmem:[%s605] ss:$16 sm:%s606]
  %s608 = scalar_lea.vmem %s0, 1
  %s609 = smov 12
  %v610 = vld [vmem:[%s608] ss:$16 sm:%s609]
  %vm611 = vcmask 1043458
  %v612 = vsel %vm611, %v610, %v607
  %s613 = scalar_lea.vmem %s0, 1
  %s614 = smov 48
  %v615 = vld [vmem:[%s613] ss:$16 sm:%s614]
  %vm616 = vcmask 1045508
  %v617 = vsel %vm616, %v615, %v612
  %s618 = scalar_lea.vmem %s0, 1
  %s619 = smov 192
  %v620 = vld [vmem:[%s618] ss:$16 sm:%s619]
  %vm621 = vcmask 1047558
  %v622 = vsel %vm621, %v620, %v617
  %623 = vrot.lane.b32.xlu0 %v622, 16
  %v624 = vpop.permute.xlu0 %623
  %vm625 = vcmask 261248
  %626 = vst.msk [vmem:[%s1] sm:$0xff] %vm625, %v624
  %s627 = scalar_lea.vmem %s0, 9
  %s628 = smov 3
  %v629 = vld [vmem:[%s627] ss:$16 sm:%s628]
  %s630 = scalar_lea.vmem %s0, 9
  %s631 = smov 12
  %v632 = vld [vmem:[%s630] ss:$16 sm:%s631]
  %vm633 = vcmask 1043458
  %v634 = vsel %vm633, %v632, %v629
  %s635 = scalar_lea.vmem %s0, 9
  %s636 = smov 48
  %v637 = vld [vmem:[%s635] ss:$16 sm:%s636]
  %vm638 = vcmask 1045508
  %v639 = vsel %vm638, %v637, %v634
  %s640 = scalar_lea.vmem %s0, 9
  %s641 = smov 192
  %v642 = vld [vmem:[%s640] ss:$16 sm:%s641]
  %vm643 = vcmask 1047558
  %v644 = vsel %vm643, %v642, %v639
  %645 = vrot.lane.b32.xlu0 %v644, 16
  %v646 = vpop.permute.xlu0 %645
  %vm647 = vcmask 261248
  %s648 = scalar_lea.vmem %s1, 8
  %649 = vst.msk [vmem:[%s648] sm:$0xff] %vm647, %v646
  %s650 = scalar_lea.vmem %s0, 129
  %s651 = smov 3
  %v652 = vld [vmem:[%s650] ss:$16 sm:%s651]
  %s653 = scalar_lea.vmem %s0, 129
  %s654 = smov 12
  %v655 = vld [vmem:[%s653] ss:$16 sm:%s654]
  %vm656 = vcmask 1043458
  %v657 = vsel %vm656, %v655, %v652
  %s658 = scalar_lea.vmem %s0, 129
  %s659 = smov 48
  %v660 = vld [vmem:[%s658] ss:$16 sm:%s659]
  %vm661 = vcmask 1045508
  %v662 = vsel %vm661, %v660, %v657
  %s663 = scalar_lea.vmem %s0, 129
  %s664 = smov 192
  %v665 = vld [vmem:[%s663] ss:$16 sm:%s664]
  %vm666 = vcmask 1047558
  %v667 = vsel %vm666, %v665, %v662
  %668 = vrot.lane.b32.xlu0 %v667, 16
  %v669 = vpop.permute.xlu0 %668
  %vm670 = vcmask 261248
  %s671 = scalar_lea.vmem %s1, 16
  %672 = vst.msk [vmem:[%s671] sm:$0xff] %vm670, %v669
  %s673 = scalar_lea.vmem %s0, 137
  %s674 = smov 3
  %v675 = vld [vmem:[%s673] ss:$16 sm:%s674]
  %s676 = scalar_lea.vmem %s0, 137
  %s677 = smov 12
  %v678 = vld [vmem:[%s676] ss:$16 sm:%s677]
  %vm679 = vcmask 1043458
  %v680 = vsel %vm679, %v678, %v675
  %s681 = scalar_lea.vmem %s0, 137
  %s682 = smov 48
  %v683 = vld [vmem:[%s681] ss:$16 sm:%s682]
  %vm684 = vcmask 1045508
  %v685 = vsel %vm684, %v683, %v680
  %s686 = scalar_lea.vmem %s0, 137
  %s687 = smov 192
  %v688 = vld [vmem:[%s686] ss:$16 sm:%s687]
  %vm689 = vcmask 1047558
  %v690 = vsel %vm689, %v688, %v685
  %691 = vrot.lane.b32.xlu0 %v690, 16
  %v692 = vpop.permute.xlu0 %691
  %vm693 = vcmask 261248
  %s694 = scalar_lea.vmem %s1, 24
  %695 = vst.msk [vmem:[%s694] sm:$0xff] %vm693, %v692

// kernel: first_conv_forward.1
$region0: #{first_conv_forward.1}
  #allocation0 [shape = 'u32[]', space=smem, size = 0x4, offset = 0x4, fixed_abs, tag = 'smem constant byte address 0x4 - core index']
  #allocation1 [shape = 'u32[144,128]{1,0:T(1,128)}', space=vmem, size = 0x12000, scoped, tag = 'internal scratch']
  %s0 = inlined_call_operand.vmem [shape: bf16[32,216], index: 0, kind: input, shape index: {}]
  %s1 = inlined_call_operand.vmem [shape: bf16[216,256], index: 1, kind: input, shape index: {}]
  %s2 = inlined_call_operand.vmem [shape: f32[256,16], index: 2, kind: input, shape index: {}]
  %s3 = inlined_call_operand.vmem [shape: f32[16,256], index: 3, kind: input, shape index: {}]
  %s4 = inlined_call_operand.vmem [shape: f32[2,16], index: 4, kind: input, shape index: {}]
  %s5 = inlined_call_operand.vmem [shape: f32[32,256], index: 5, kind: output, shape index: {}]
  %s6 = sld [smem:[#allocation0]]
  $region30: #{first_conv_forward.1} parent=0
    _
  %s8 = ssub.s32 1, %s6
  %s9 = scalar_select 0, %s8, %s6
  // Predicated region
  $region2: #{first_conv_forward.1} parent=0 // pred_check
    _
  $region3: #{first_conv_forward.1} parent=0 // pred_check_branch
    %11 = sbr.rel (0) target = $region5
  $region4: #{first_conv_forward.1} parent=0 // pred_region
    _
  $region5: #{first_conv_forward.1} parent=0 // pred_fallthru
    _
  // Predicated region
  $region6: #{first_conv_forward.1} parent=0 // pred_check
    _
  $region7: #{first_conv_forward.1} parent=0 // pred_check_branch
    %13 = sbr.rel (0) target = $region9
  $region8: #{first_conv_forward.1} parent=0 // pred_region
    _
  $region9: #{first_conv_forward.1} parent=0 // pred_fallthru
    _
  // Predicated region
  $region10: #{first_conv_forward.1} parent=0 // pred_check
    _
  $region11: #{first_conv_forward.1} parent=0 // pred_check_branch
    %15 = sbr.rel (0) target = $region13
  $region12: #{first_conv_forward.1} parent=0 // pred_region
    _
  $region13: #{first_conv_forward.1} parent=0 // pred_fallthru
    _
  // Predicated region
  $region14: #{first_conv_forward.1} parent=0 // pred_check
    _
  $region15: #{first_conv_forward.1} parent=0 // pred_check_branch
    %17 = sbr.rel (0) target = $region17
  $region16: #{first_conv_forward.1} parent=0 // pred_region
    _
  $region17: #{first_conv_forward.1} parent=0 // pred_fallthru
    _
  // Predicated region
  $region18: #{first_conv_forward.1} parent=0 // pred_check
    _
  $region19: #{first_conv_forward.1} parent=0 // pred_check_branch
    %19 = sbr.rel (0) target = $region21
  $region20: #{first_conv_forward.1} parent=0 // pred_region
    _
  $region21: #{first_conv_forward.1} parent=0 // pred_fallthru
    _
  %v21 = vld [vmem:[%s0] sm:$0xff]
  %v22 = vld [vmem:[%s0 + $0x8] sm:$0xff]
  %v23 = vld [vmem:[%s0 + $0x10] sm:$0xff]
  %v24 = vld [vmem:[%s0 + $0x18] sm:$0xff]
  %v25 = vld [vmem:[%s1] sm:$0xff]
  %v26 = vld [vmem:[%s1 + $0x8] sm:$0xff]
  %v27 = vld [vmem:[%s1 + $0x10] sm:$0xff]
  %v28 = vld [vmem:[%s1 + $0x18] sm:$0xff]
  %v29 = vld [vmem:[%s1 + $0x20] sm:$0xff]
  %v30 = vld [vmem:[%s1 + $0x28] sm:$0xff]
  %v31 = vld [vmem:[%s1 + $0x30] sm:$0xff]
  %v32 = vld [vmem:[%s1 + $0x38] sm:$0xff]
  %v33 = vld [vmem:[%s1 + $0x40] sm:$0xff]
  %v34 = vld [vmem:[%s1 + $0x48] sm:$0xff]
  %v35 = vld [vmem:[%s1 + $0x50] sm:$0xff]
  %v36 = vld [vmem:[%s1 + $0x58] sm:$0xff]
  %v37 = vld [vmem:[%s1 + $0x60] sm:$0xff]
  %v38 = vld [vmem:[%s1 + $0x68] sm:$0xff]
  %v39 = vld [vmem:[%s1 + $0x70] sm:$0xff]
  %v40 = vld [vmem:[%s1 + $0x78] sm:$0xff]
  %v41 = vld [vmem:[%s1 + $0x80] sm:$0xff]
  %v42 = vld [vmem:[%s1 + $0x88] sm:$0xff]
  %v43 = vld [vmem:[%s1 + $0x90] sm:$0xff]
  %v44 = vld [vmem:[%s1 + $0x98] sm:$0xff]
  %v45 = vld [vmem:[%s1 + $0xa0] sm:$0xff]
  %v46 = vld [vmem:[%s1 + $0xa8] sm:$0xff]
  %v47 = vld [vmem:[%s1 + $0xb0] sm:$0xff]
  %v48 = vld [vmem:[%s1 + $0xb8] sm:$0xff]
  %v49 = vld [vmem:[%s1 + $0xc0] sm:$0xff]
  %v50 = vld [vmem:[%s1 + $0xc8] sm:$0xff]
  %v51 = vld [vmem:[%s1 + $0xd0] sm:$0xff]
  %v56 = vunpack.c.l.b16 %v21
  %v57 = vunpack.c.h.b16 %v21
  %v58 = vunpack.c.l.b16 %v22
  %v59 = vunpack.c.h.b16 %v22
  %v60 = vunpack.c.l.b16 %v23
  %v61 = vunpack.c.h.b16 %v23
  %v62 = vunpack.c.l.b16 %v24
  %v63 = vunpack.c.h.b16 %v24
  %v64 = vpack.c.b16 %v58, %v56
  %v65 = vpack.c.b16 %v59, %v57
  %v66 = vpack.c.b16 %v62, %v60
  %v67 = vpack.c.b16 %v63, %v61
  %v97 = vunpack.c.l.b16 %v25
  %v98 = vunpack.c.h.b16 %v25
  %v99 = vunpack.c.l.b16 %v26
  %v100 = vunpack.c.h.b16 %v26
  %v101 = vunpack.c.l.b16 %v27
  %v102 = vunpack.c.h.b16 %v27
  %v103 = vunpack.c.l.b16 %v28
  %v104 = vunpack.c.h.b16 %v28
  %v105 = vunpack.c.l.b16 %v29
  %v106 = vunpack.c.h.b16 %v29
  %v107 = vunpack.c.l.b16 %v30
  %v108 = vunpack.c.h.b16 %v30
  %v109 = vunpack.c.l.b16 %v31
  %v110 = vunpack.c.h.b16 %v31
  %v111 = vunpack.c.l.b16 %v32
  %v112 = vunpack.c.h.b16 %v32
  %v113 = vunpack.c.l.b16 %v33
  %v114 = vunpack.c.h.b16 %v33
  %v115 = vunpack.c.l.b16 %v34
  %v116 = vunpack.c.h.b16 %v34
  %v117 = vunpack.c.l.b16 %v35
  %v118 = vunpack.c.h.b16 %v35
  %v119 = vunpack.c.l.b16 %v36
  %v120 = vunpack.c.h.b16 %v36
  %v121 = vunpack.c.l.b16 %v37
  %v122 = vunpack.c.h.b16 %v37
  %v123 = vunpack.c.l.b16 %v38
  %v124 = vunpack.c.h.b16 %v38
  %v125 = vunpack.c.l.b16 %v39
  %v126 = vunpack.c.h.b16 %v39
  %v127 = vunpack.c.l.b16 %v40
  %v128 = vunpack.c.h.b16 %v40
  %v129 = vunpack.c.l.b16 %v41
  %v130 = vunpack.c.h.b16 %v41
  %v131 = vunpack.c.l.b16 %v42
  %v132 = vunpack.c.h.b16 %v42
  %v133 = vunpack.c.l.b16 %v43
  %v134 = vunpack.c.h.b16 %v43
  %v135 = vunpack.c.l.b16 %v44
  %v136 = vunpack.c.h.b16 %v44
  %v137 = vunpack.c.l.b16 %v45
  %v138 = vunpack.c.h.b16 %v45
  %v139 = vunpack.c.l.b16 %v46
  %v140 = vunpack.c.h.b16 %v46
  %v141 = vunpack.c.l.b16 %v47
  %v142 = vunpack.c.h.b16 %v47
  %v143 = vunpack.c.l.b16 %v48
  %v144 = vunpack.c.h.b16 %v48
  %v145 = vunpack.c.l.b16 %v49
  %v146 = vunpack.c.h.b16 %v49
  %v147 = vunpack.c.l.b16 %v50
  %v148 = vunpack.c.h.b16 %v50
  %v149 = vunpack.c.l.b16 %v51
  %v150 = vunpack.c.h.b16 %v51
  %v151 = vpack.c.b16 %v99, %v97
  %v152 = vpack.c.b16 %v100, %v98
  %v153 = vpack.c.b16 %v103, %v101
  %v154 = vpack.c.b16 %v104, %v102
  %v155 = vpack.c.b16 %v107, %v105
  %v156 = vpack.c.b16 %v108, %v106
  %v157 = vpack.c.b16 %v111, %v109
  %v158 = vpack.c.b16 %v112, %v110
  %v159 = vpack.c.b16 %v115, %v113
  %v160 = vpack.c.b16 %v116, %v114
  %v161 = vpack.c.b16 %v119, %v117
  %v162 = vpack.c.b16 %v120, %v118
  %v163 = vpack.c.b16 %v123, %v121
  %v164 = vpack.c.b16 %v124, %v122
  %v165 = vpack.c.b16 %v127, %v125
  %v166 = vpack.c.b16 %v128, %v126
  %v167 = vpack.c.b16 %v131, %v129
  %v168 = vpack.c.b16 %v132, %v130
  %v169 = vpack.c.b16 %v135, %v133
  %v170 = vpack.c.b16 %v136, %v134
  %v171 = vpack.c.b16 %v139, %v137
  %v172 = vpack.c.b16 %v140, %v138
  %v173 = vpack.c.b16 %v143, %v141
  %v174 = vpack.c.b16 %v144, %v142
  %v175 = vpack.c.b16 %v147, %v145
  %v176 = vpack.c.b16 %v148, %v146
  %v177 = vpack.c.b16 %v149, %v149
  %v178 = vpack.c.b16 %v150, %v150
  %vm205 = vcmask 719872
  %v207 = vsel %vm205, %v65, 0
  %v210 = vsel %vm205, %v67, 0
  %vm212 = vcmask 1043456
  %v214 = vsel %vm212, %v177, 0
  %v217 = vsel %vm212, %v178, 0
  %219 = vmatprep.subr.bf16.mxu0 %v152
  %220 = vmatpush1.bf16.msra.mxu0 %v151
  %221 = vmatprep.subr.bf16.mxu0 %v154
  %222 = vmatpush1.bf16.msra.mxu0 %v153
  %223 = vmatprep.subr.bf16.mxu0 %v156
  %224 = vmatpush1.bf16.msra.mxu0 %v155
  %225 = vmatprep.subr.bf16.mxu0 %v158
  %226 = vmatpush1.bf16.msra.mxu0 %v157
  %227 = vmatprep.subr.bf16.mxu0 %v160
  %228 = vmatpush1.bf16.msra.mxu0 %v159
  %229 = vmatprep.subr.bf16.mxu0 %v162
  %230 = vmatpush1.bf16.msra.mxu0 %v161
  %231 = vmatprep.subr.bf16.mxu0 %v164
  %232 = vmatpush1.bf16.msra.mxu0 %v163
  %233 = vmatprep.subr.bf16.mxu0 %v166
  %234 = vmatpush1.bf16.msra.mxu0 %v165
  %235 = vmatprep.subr.bf16.mxu0 %v168
  %236 = vmatpush1.bf16.msra.mxu0 %v167
  %237 = vmatprep.subr.bf16.mxu0 %v170
  %238 = vmatpush1.bf16.msra.mxu0 %v169
  %239 = vmatprep.subr.bf16.mxu0 %v172
  %240 = vmatpush1.bf16.msra.mxu0 %v171
  %241 = vmatprep.subr.bf16.mxu0 %v174
  %242 = vmatpush1.bf16.msra.mxu0 %v173
  %243 = vmatprep.subr.bf16.mxu0 %v176
  %244 = vmatpush1.bf16.msra.mxu0 %v175
  %245 = vmatprep.subr.bf16.mxu0 %v217
  %246 = vmatpush1.bf16.msra.mxu0 %v214
  %247 = vmatprep.subr.bf16.mxu0 0
  %248 = vmatpush1.bf16.msra.mxu0 0
  %249 = vmatprep.subr.bf16.mxu0 0
  %250 = vmatpush1.bf16.msra.mxu0 0
  %251 = vmatprep.mubr.bf16.mxu0 %v207
  %252 = vmatmul.mubr.bf16.gmra.mrb[0].mxu0 %v64
  %v253 = vpop.f32.mrb[0].mxu0
  %v254 = vadd.f32 0.0, %v253
  %v255 = vpop.f32.mrb[0].mxu0
  %v256 = vadd.f32 0.0, %v255
  %v257 = vpop.f32.mrb[0].mxu0
  %v258 = vadd.f32 0.0, %v257
  %v259 = vpop.f32.mrb[0].mxu0
  %v260 = vadd.f32 0.0, %v259
  %261 = vmatprep.mubr.bf16.mxu0 %v210
  %262 = vmatmul.mubr.bf16.gmra.mrb[0].mxu0 %v66
  %v263 = vpop.f32.mrb[0].mxu0
  %v264 = vadd.f32 0.0, %v263
  %v265 = vpop.f32.mrb[0].mxu0
  %v266 = vadd.f32 0.0, %v265
  %v267 = vpop.f32.mrb[0].mxu0
  %v268 = vadd.f32 0.0, %v267
  %v269 = vpop.f32.mrb[0].mxu0
  %v270 = vadd.f32 0.0, %v269
  %271 = vdwg.mxu0
  %v272 = vadd.f32 %v254, %v258
  %v273 = vadd.f32 %v272, %v264
  %v274 = vadd.f32 %v273, %v268
  %v275 = vrot.slane %v274, 4
  %v276 = vadd.f32 %v274, %v275
  %v277 = vrot.slane %v276, 2
  %v278 = vadd.f32 %v276, %v277
  %v279 = vrot.slane %v278, 1
  %v280 = vadd.f32 %v278, %v279
  %v281 = vadd.f32 %v256, %v260
  %v282 = vadd.f32 %v281, %v266
  %v283 = vadd.f32 %v282, %v270
  %v284 = vrot.slane %v283, 4
  %v285 = vadd.f32 %v283, %v284
  %v286 = vrot.slane %v285, 2
  %v287 = vadd.f32 %v285, %v286
  %v288 = vrot.slane %v287, 1
  %v289 = vadd.f32 %v287, %v288
  %v290 = vmul.f32 %v254, %v254
  %v291 = vmul.f32 %v256, %v256
  %v292 = vmul.f32 %v258, %v258
  %v293 = vmul.f32 %v260, %v260
  %v294 = vmul.f32 %v264, %v264
  %v295 = vmul.f32 %v266, %v266
  %v296 = vmul.f32 %v268, %v268
  %v297 = vmul.f32 %v270, %v270
  %v298 = vadd.f32 %v290, %v292
  %v299 = vadd.f32 %v298, %v294
  %v300 = vadd.f32 %v299, %v296
  %v301 = vrot.slane %v300, 4
  %v302 = vadd.f32 %v300, %v301
  %v303 = vrot.slane %v302, 2
  %v304 = vadd.f32 %v302, %v303
  %v305 = vrot.slane %v304, 1
  %v306 = vadd.f32 %v304, %v305
  %v307 = vadd.f32 %v291, %v293
  %v308 = vadd.f32 %v307, %v295
  %v309 = vadd.f32 %v308, %v297
  %v310 = vrot.slane %v309, 4
  %v311 = vadd.f32 %v309, %v310
  %v312 = vrot.slane %v311, 2
  %v313 = vadd.f32 %v311, %v312
  %v314 = vrot.slane %v313, 1
  %v315 = vadd.f32 %v313, %v314
  %vm316 = vcmask 1040384
  %v317 = vsel %vm316, %v280, %v306
  %v318 = vsel %vm316, %v289, %v315
  %v319 = vld [vmem:[%s2] sm:$0xff]
  %v320 = vld [vmem:[%s2 + $0x8] sm:$0xff]
  %v321 = vld [vmem:[%s2 + $0x10] sm:$0xff]
  %v322 = vld [vmem:[%s2 + $0x18] sm:$0xff]
  %v323 = vld [vmem:[%s2 + $0x20] sm:$0xff]
  %v324 = vld [vmem:[%s2 + $0x28] sm:$0xff]
  %v325 = vld [vmem:[%s2 + $0x30] sm:$0xff]
  %v326 = vld [vmem:[%s2 + $0x38] sm:$0xff]
  %v327 = vld [vmem:[%s2 + $0x40] sm:$0xff]
  %v328 = vld [vmem:[%s2 + $0x48] sm:$0xff]
  %v329 = vld [vmem:[%s2 + $0x50] sm:$0xff]
  %v330 = vld [vmem:[%s2 + $0x58] sm:$0xff]
  %v331 = vld [vmem:[%s2 + $0x60] sm:$0xff]
  %v332 = vld [vmem:[%s2 + $0x68] sm:$0xff]
  %v333 = vld [vmem:[%s2 + $0x70] sm:$0xff]
  %v334 = vld [vmem:[%s2 + $0x78] sm:$0xff]
  %v335 = vld [vmem:[%s2 + $0x80] sm:$0xff]
  %v336 = vld [vmem:[%s2 + $0x88] sm:$0xff]
  %v337 = vld [vmem:[%s2 + $0x90] sm:$0xff]
  %v338 = vld [vmem:[%s2 + $0x98] sm:$0xff]
  %v339 = vld [vmem:[%s2 + $0xa0] sm:$0xff]
  %v340 = vld [vmem:[%s2 + $0xa8] sm:$0xff]
  %v341 = vld [vmem:[%s2 + $0xb0] sm:$0xff]
  %v342 = vld [vmem:[%s2 + $0xb8] sm:$0xff]
  %v343 = vld [vmem:[%s2 + $0xc0] sm:$0xff]
  %v344 = vld [vmem:[%s2 + $0xc8] sm:$0xff]
  %v345 = vld [vmem:[%s2 + $0xd0] sm:$0xff]
  %v346 = vld [vmem:[%s2 + $0xd8] sm:$0xff]
  %v347 = vld [vmem:[%s2 + $0xe0] sm:$0xff]
  %v348 = vld [vmem:[%s2 + $0xe8] sm:$0xff]
  %v349 = vld [vmem:[%s2 + $0xf0] sm:$0xff]
  %v350 = vld [vmem:[%s2 + $0xf8] sm:$0xff]
  %351 = vmatprep.subr.mxu0 0.0
  %352 = vmatpush1.msra.mxu0 %v319
  %353 = vmatprep.subr.mxu0 0.0
  %354 = vmatpush1.msra.mxu0 %v320
  %355 = vmatprep.subr.mxu0 0.0
  %356 = vmatpush1.msra.mxu0 %v321
  %357 = vmatprep.subr.mxu0 0.0
  %358 = vmatpush1.msra.mxu0 %v322
  %359 = vmatprep.subr.mxu0 0.0
  %360 = vmatpush1.msra.mxu0 %v323
  %361 = vmatprep.subr.mxu0 0.0
  %362 = vmatpush1.msra.mxu0 %v324
  %363 = vmatprep.subr.mxu0 0.0
  %364 = vmatpush1.msra.mxu0 %v325
  %365 = vmatprep.subr.mxu0 0.0
  %366 = vmatpush1.msra.mxu0 %v326
  %367 = vmatprep.subr.mxu0 0.0
  %368 = vmatpush1.msra.mxu0 %v327
  %369 = vmatprep.subr.mxu0 0.0
  %370 = vmatpush1.msra.mxu0 %v328
  %371 = vmatprep.subr.mxu0 0.0
  %372 = vmatpush1.msra.mxu0 %v329
  %373 = vmatprep.subr.mxu0 0.0
  %374 = vmatpush1.msra.mxu0 %v330
  %375 = vmatprep.subr.mxu0 0.0
  %376 = vmatpush1.msra.mxu0 %v331
  %377 = vmatprep.subr.mxu0 0.0
  %378 = vmatpush1.msra.mxu0 %v332
  %379 = vmatprep.subr.mxu0 0.0
  %380 = vmatpush1.msra.mxu0 %v333
  %381 = vmatprep.subr.mxu0 0.0
  %382 = vmatpush1.msra.mxu0 %v334
  %383 = vmatprep.subr.mxu0 0.0
  %384 = vmatpush1.msra.mxu0 %v335
  %385 = vmatprep.subr.mxu0 0.0
  %386 = vmatpush1.msra.mxu0 %v336
  %387 = vmatprep.subr.mxu0 0.0
  %388 = vmatpush1.msra.mxu0 %v337
  %389 = vmatprep.subr.mxu0 0.0
  %390 = vmatpush1.msra.mxu0 %v338
  %391 = vmatprep.subr.mxu0 0.0
  %392 = vmatpush1.msra.mxu0 %v339
  %393 = vmatprep.subr.mxu0 0.0
  %394 = vmatpush1.msra.mxu0 %v340
  %395 = vmatprep.subr.mxu0 0.0
  %396 = vmatpush1.msra.mxu0 %v341
  %397 = vmatprep.subr.mxu0 0.0
  %398 = vmatpush1.msra.mxu0 %v342
  %399 = vmatprep.subr.mxu0 0.0
  %400 = vmatpush1.msra.mxu0 %v343
  %401 = vmatprep.subr.mxu0 0.0
  %402 = vmatpush1.msra.mxu0 %v344
  %403 = vmatprep.subr.mxu0 0.0
  %404 = vmatpush1.msra.mxu0 %v345
  %405 = vmatprep.subr.mxu0 0.0
  %406 = vmatpush1.msra.mxu0 %v346
  %407 = vmatprep.subr.mxu0 0.0
  %408 = vmatpush1.msra.mxu0 %v347
  %409 = vmatprep.subr.mxu0 0.0
  %410 = vmatpush1.msra.mxu0 %v348
  %411 = vmatprep.subr.mxu0 0.0
  %412 = vmatpush1.msra.mxu0 %v349
  %413 = vmatprep.subr.mxu0 0.0
  %414 = vmatpush1.msra.mxu0 %v350
  %415 = vmatprep.mubr.f32.mxu0 %v318
  %416 = vmatmul.mubr.f32.gmra.mrb[0].mxu0 %v317
  %v417 = vpop.f32.mrb[0].mxu0
  %v418 = vadd.f32 0.0, %v417
  %v419 = vpop.f32.mrb[0].mxu0
  %420 = vdwg.mxu0
  %v421 = vmul.f32 %v418, %v418
  %v423 = vrot.slane %v421, 7
  %v425 = vsub.f32 %v418, %v423
  %v426 = vadd.f32 %v425, 1e-05
  %v427 = vrsqrt.pop %v426
  %v428 = vld [vmem:[%s4] sm:$0x1]
  %v430 = vrot.slane %v427, 1
  %v432 = vmul.f32 %v428, %v430
  %v433 = vld [vmem:[%s4 + $0x1] sm:$0x1]
  %v434 = vmul.f32 %v418, %v432
  %v435 = vsub.f32 %v433, %v434
  %v437 = vrot.slane %v435, 7
  %v439 = vsel %vm316, %v432, %v437
  %v440 = vld [vmem:[%s3] sm:$0xff]
  %v441 = vld [vmem:[%s3 + $0x8] sm:$0xff]
  %v442 = vld [vmem:[%s3 + $0x10] sm:$0xff]
  %v443 = vld [vmem:[%s3 + $0x18] sm:$0xff]
  %vm444 = vcmask 130048
  %v446 = vsel %vm444, %v439, 0
  %448 = vmatprep.subr.mxu0 %v441
  %449 = vmatpush1.msra.mxu0 %v440
  %450 = vmatprep.subr.mxu0 %v443
  %451 = vmatpush1.msra.mxu0 %v442
  %452 = vmatprep.subr.mxu0 0.0
  %453 = vmatpush1.msra.mxu0 0.0
  %454 = vmatprep.subr.mxu0 0.0
  %455 = vmatpush1.msra.mxu0 0.0
  %456 = vmatprep.subr.mxu0 0.0
  %457 = vmatpush1.msra.mxu0 0.0
  %458 = vmatprep.subr.mxu0 0.0
  %459 = vmatpush1.msra.mxu0 0.0
  %460 = vmatprep.subr.mxu0 0.0
  %461 = vmatpush1.msra.mxu0 0.0
  %462 = vmatprep.subr.mxu0 0.0
  %463 = vmatpush1.msra.mxu0 0.0
  %464 = vmatprep.subr.mxu0 0.0
  %465 = vmatpush1.msra.mxu0 0.0
  %466 = vmatprep.subr.mxu0 0.0
  %467 = vmatpush1.msra.mxu0 0.0
  %468 = vmatprep.subr.mxu0 0.0
  %469 = vmatpush1.msra.mxu0 0.0
  %470 = vmatprep.subr.mxu0 0.0
  %471 = vmatpush1.msra.mxu0 0.0
  %472 = vmatprep.subr.mxu0 0.0
  %473 = vmatpush1.msra.mxu0 0.0
  %474 = vmatprep.subr.mxu0 0.0
  %475 = vmatpush1.msra.mxu0 0.0
  %476 = vmatprep.subr.mxu0 0.0
  %477 = vmatpush1.msra.mxu0 0.0
  %478 = vmatprep.subr.mxu0 0.0
  %479 = vmatpush1.msra.mxu0 0.0
  %480 = vmatprep.subr.mxu0 0.0
  %481 = vmatpush1.msra.mxu0 0.0
  %482 = vmatprep.subr.mxu0 0.0
  %483 = vmatpush1.msra.mxu0 0.0
  %484 = vmatprep.subr.mxu0 0.0
  %485 = vmatpush1.msra.mxu0 0.0
  %486 = vmatprep.subr.mxu0 0.0
  %487 = vmatpush1.msra.mxu0 0.0
  %488 = vmatprep.subr.mxu0 0.0
  %489 = vmatpush1.msra.mxu0 0.0
  %490 = vmatprep.subr.mxu0 0.0
  %491 = vmatpush1.msra.mxu0 0.0
  %492 = vmatprep.subr.mxu0 0.0
  %493 = vmatpush1.msra.mxu0 0.0
  %494 = vmatprep.subr.mxu0 0.0
  %495 = vmatpush1.msra.mxu0 0.0
  %496 = vmatprep.subr.mxu0 0.0
  %497 = vmatpush1.msra.mxu0 0.0
  %498 = vmatprep.subr.mxu0 0.0
  %499 = vmatpush1.msra.mxu0 0.0
  %500 = vmatprep.subr.mxu0 0.0
  %501 = vmatpush1.msra.mxu0 0.0
  %502 = vmatprep.subr.mxu0 0.0
  %503 = vmatpush1.msra.mxu0 0.0
  %504 = vmatprep.subr.mxu0 0.0
  %505 = vmatpush1.msra.mxu0 0.0
  %506 = vmatprep.subr.mxu0 0.0
  %507 = vmatpush1.msra.mxu0 0.0
  %508 = vmatprep.subr.mxu0 0.0
  %509 = vmatpush1.msra.mxu0 0.0
  %510 = vmatprep.subr.mxu0 0.0
  %511 = vmatpush1.msra.mxu0 0.0
  %512 = vmatprep.mubr.f32.mxu0 0.0
  %513 = vmatmul.mubr.f32.gmra.mrb[0].mxu0 %v446
  %v514 = vpop.f32.mrb[0].mxu0
  %v515 = vadd.f32 0.0, %v514
  %v516 = vpop.f32.mrb[0].mxu0
  %v517 = vadd.f32 0.0, %v516
  %518 = vdwg.mxu0
  %v519 = vlaneseq
  %v520 = vshrl.u32 %v519, 7
  %v521 = vsub.s32 0, %v520
  %v522 = vrot.slane %v515, %v521
  %v523 = vlaneseq
  %v524 = vshrl.u32 %v523, 7
  %v525 = vsub.s32 0, %v524
  %v526 = vrot.slane %v517, %v525
  %v527 = vmul.f32 %v254, %v522
  %v528 = vmul.f32 %v256, %v526
  %v529 = vmul.f32 %v258, %v522
  %v530 = vmul.f32 %v260, %v526
  %v531 = vmul.f32 %v264, %v522
  %v532 = vmul.f32 %v266, %v526
  %v533 = vmul.f32 %v268, %v522
  %v534 = vmul.f32 %v270, %v526
  %v535 = vlaneseq
  %v536 = vshrl.u32 %v535, 7
  %v537 = vsub.s32 1, %v536
  %v538 = vrot.slane %v515, %v537
  %v539 = vlaneseq
  %v540 = vshrl.u32 %v539, 7
  %v541 = vsub.s32 1, %v540
  %v542 = vrot.slane %v517, %v541
  %v543 = vadd.f32 %v527, %v538
  %v544 = vadd.f32 %v528, %v542
  %v545 = vadd.f32 %v529, %v538
  %v546 = vadd.f32 %v530, %v542
  %v547 = vadd.f32 %v531, %v538
  %v548 = vadd.f32 %v532, %v542
  %v549 = vadd.f32 %v533, %v538
  %v550 = vadd.f32 %v534, %v542
  %v551 = vmax.f32 %v543, 0.0
  %v552 = vmax.f32 %v544, 0.0
  %v553 = vmax.f32 %v545, 0.0
  %v554 = vmax.f32 %v546, 0.0
  %v555 = vmax.f32 %v547, 0.0
  %v556 = vmax.f32 %v548, 0.0
  %v557 = vmax.f32 %v549, 0.0
  %v558 = vmax.f32 %v550, 0.0
  %559 = vst [vmem:[%s5] sm:$0xff] %v551
  %560 = vst [vmem:[%s5 + $0x8] sm:$0xff] %v552
  %561 = vst [vmem:[%s5 + $0x10] sm:$0xff] %v553
  %562 = vst [vmem:[%s5 + $0x18] sm:$0xff] %v554
  %563 = vst [vmem:[%s5 + $0x20] sm:$0xff] %v555
  %564 = vst [vmem:[%s5 + $0x28] sm:$0xff] %v556
  %565 = vst [vmem:[%s5 + $0x30] sm:$0xff] %v557
  %566 = vst [vmem:[%s5 + $0x38] sm:$0xff] %v558
  // Predicated region
  $region22: #{first_conv_forward.1} parent=0 // pred_check
    _
  $region23: #{first_conv_forward.1} parent=0 // pred_check_branch
    %568 = sbr.rel (0) target = $region25
  $region24: #{first_conv_forward.1} parent=0 // pred_region
    _
  $region25: #{first_conv_forward.1} parent=0 // pred_fallthru
    _
  // Predicated region
  $region26: #{first_conv_forward.1} parent=0 // pred_check
    _
  $region27: #{first_conv_forward.1} parent=0 // pred_check_branch
    %570 = sbr.rel (0) target = $region29
  $region28: #{first_conv_forward.1} parent=0 // pred_region
    _
  $region29: #{first_conv_forward.1} parent=0 // pred_fallthru
    _

</llo_original>
